<compile_context>
chip_gen: v6e
topology: v6e:2x2x1
jax: 0.10.0
libtpu: 0.0.40
codegen_flags: <defaults>
</compile_context>

<pallas_src>
import jax
import jax.numpy as jnp
from jax.experimental import pallas as pl
from jax.experimental.pallas import tpu as pltpu


def _round_up(x, m):
    return ((x + m - 1) // m) * m


def _generator_kernel(x_ref, w_ref, b_ref, o_ref, logits_sc, m_sc, l_sc):
    # x_ref      : (tm, d_model_p)   bf16  (resident across vocab tiles)
    # w_ref      : (d_model_p, tn)   bf16  (streamed per vocab tile)
    # b_ref      : (1, tn)           f32
    # o_ref      : (tm, vocab_p)     out   (resident across vocab tiles)
    # logits_sc  : (tm, vocab_p)     f32   raw-logit scratch
    # m_sc, l_sc : (tm, 1)           f32   running max / running sum-exp
    j = pl.program_id(1)
    nv = pl.num_programs(1)
    tn = w_ref.shape[1]

    @pl.when(j == 0)
    def _init():
        m_sc[...] = jnp.full_like(m_sc, -jnp.inf)
        l_sc[...] = jnp.zeros_like(l_sc)

    # MXU matmul (bf16 in, f32 accumulate) + bias for this vocab tile.
    s = jnp.dot(x_ref[...], w_ref[...],
                preferred_element_type=jnp.float32) + b_ref[...]

    # Stash raw f32 logits for the finalize pass.
    col = pl.multiple_of(j * tn, 128)
    logits_sc[:, pl.ds(col, tn)] = s

    # Online logsumexp update (exp work interleaved with the per-tile matmuls).
    m_prev = m_sc[...]
    m_new = jnp.maximum(m_prev, jnp.max(s, axis=-1, keepdims=True))
    l_sc[...] = (l_sc[...] * jnp.exp(m_prev - m_new)
                 + jnp.sum(jnp.exp(s - m_new), axis=-1, keepdims=True))
    m_sc[...] = m_new

    @pl.when(j == nv - 1)
    def _finalize():
        lse = m_sc[...] + jnp.log(l_sc[...])
        o_ref[...] = (logits_sc[...] - lse).astype(o_ref.dtype)


def generator_forward(x, w_t, b, *, tm=256, tn=2048, out_dtype=jnp.bfloat16,
                      vmem_limit_bytes=64 * 1024 * 1024):
    """log_softmax(x @ w_t + b, axis=-1).

    x   : (..., d_model)
    w_t : (d_model, vocab)   -- transpose of torch nn.Linear.weight
    b   : (vocab,)
    Returns (..., vocab) log-probabilities in `out_dtype`.
    """
    *lead, d_model = x.shape
    vocab = w_t.shape[1]

    x2 = x.reshape(-1, d_model)
    n = x2.shape[0]

    # ---- tile sizing ------------------------------------------------------
    # Keep at least 2 row tiles when possible (v7x megacore), sublane-aligned.
    tm = max(8, min(tm, _round_up(max(n // 2, 1), 8)))
    n_pad = _round_up(n, tm)

    vocab_128 = _round_up(vocab, 128)
    tn = min(_round_up(tn, 128), vocab_128)
    vocab_p = _round_up(vocab_128, tn)

    d_model_p = _round_up(d_model, 128)  # full-width MXU contraction

    # ---- pad / cast operands ---------------------------------------------
    xp = jnp.zeros((n_pad, d_model_p), jnp.bfloat16)
    xp = xp.at[:n, :d_model].set(x2.astype(jnp.bfloat16))

    wp = jnp.zeros((d_model_p, vocab_p), jnp.bfloat16)
    wp = wp.at[:d_model, :vocab].set(w_t.astype(jnp.bfloat16))

    # Padded vocab columns get a hugely negative bias so they vanish in softmax.
    bp = jnp.full((1, vocab_p), -1e30, jnp.float32)
    bp = bp.at[0, :vocab].set(b.astype(jnp.float32))

    grid = (n_pad // tm, vocab_p // tn)

    out = pl.pallas_call(
        _generator_kernel,
        out_shape=jax.ShapeDtypeStruct((n_pad, vocab_p), out_dtype),
        grid_spec=pltpu.PrefetchScalarGridSpec(
            num_scalar_prefetch=0,
            grid=grid,
            in_specs=[
                pl.BlockSpec((tm, d_model_p), lambda i, j: (i, 0)),
                pl.BlockSpec((d_model_p, tn), lambda i, j: (0, j)),
                pl.BlockSpec((1, tn), lambda i, j: (0, j)),
            ],
            out_specs=pl.BlockSpec((tm, vocab_p), lambda i, j: (i, 0)),
            scratch_shapes=[
                pltpu.VMEM((tm, vocab_p), jnp.float32),
                pltpu.VMEM((tm, 1), jnp.float32),
                pltpu.VMEM((tm, 1), jnp.float32),
            ],
        ),
        compiler_params=pltpu.CompilerParams(
            dimension_semantics=("parallel", "arbitrary"),
            vmem_limit_bytes=vmem_limit_bytes,
        ),
    )(xp, wp, bp)

    out = out[:n, :vocab]
    return out.reshape(*lead, vocab)
    # TODO(synk): if the consumer is NLL/cross-entropy, fuse it here (emit only
    # per-row logsumexp + gathered target logit) to avoid the (N, vocab) write.


def _check(x, w_t, b, *, tn, atol):
    out = generator_forward(x, w_t, b, tn=tn)
    out = jax.block_until_ready(out)
    # Reference mirroring the bf16-input path, math in f32.
    xb = x.astype(jnp.bfloat16).astype(jnp.float32)
    wb = w_t.astype(jnp.bfloat16).astype(jnp.float32)
    ref = jax.nn.log_softmax(xb @ wb + b.astype(jnp.float32), axis=-1)
    out_f32 = out.astype(jnp.float32)
    assert out.shape == ref.shape, (out.shape, ref.shape)
    max_err = float(jnp.max(jnp.abs(out_f32 - ref)))
    assert max_err < atol, f"max abs err {max_err} >= {atol}"
    row_sums = jnp.sum(jnp.exp(out_f32), axis=-1)
    assert float(jnp.max(jnp.abs(row_sums - 1.0))) < 2e-2
    return out


if __name__ == "__main__":
    key = jax.random.PRNGKey(0)
    k1, k2, k3, k4, k5, k6 = jax.random.split(key, 6)

    # Primary check: shapes consistent with the module (batch=2, seq=8,
    # d_model=32, vocab=128). nn.Linear weight is (vocab, d_model); we pass
    # its transpose.
    batch, seq, d_model, vocab = 2, 8, 32, 128
    x = jax.random.normal(k1, (batch, seq, d_model), dtype=jnp.float32)
    w_t = jax.random.normal(k2, (d_model, vocab), dtype=jnp.float32) * 0.05
    b = jax.random.normal(k3, (vocab,), dtype=jnp.float32) * 0.05
    _check(x, w_t, b, tn=2048, atol=7e-2)

    # Secondary check: exercises multiple vocab tiles (online logsumexp path)
    # and row / vocab padding (n not a multiple of the row tile).
    batch2, seq2, d_model2, vocab2 = 3, 5, 32, 384
    x2 = jax.random.normal(k4, (batch2, seq2, d_model2), dtype=jnp.float32)
    w_t2 = jax.random.normal(k5, (d_model2, vocab2), dtype=jnp.float32) * 0.05
    b2 = jax.random.normal(k6, (vocab2,), dtype=jnp.float32) * 0.05
    _check(x2, w_t2, b2, tn=128, atol=7e-2)

    print("KERNEL_OK")
</pallas_src>

<mosaic_0001>
module attributes {stable_mosaic.version = 11 : i64} {
  func.func @_generator_kernel(%arg0: i32, %arg1: i32, %arg2: memref<8x128xbf16, #tpu.memory_space<vmem>>, %arg3: memref<128x128xbf16, #tpu.memory_space<vmem>>, %arg4: memref<1x128xf32, #tpu.memory_space<vmem>>, %arg5: memref<8x128xbf16, #tpu.memory_space<vmem>>, %arg6: memref<8x128xf32, #tpu.memory_space<vmem>>, %arg7: memref<8x1xf32, #tpu.memory_space<vmem>>, %arg8: memref<8x1xf32, #tpu.memory_space<vmem>>) attributes {dimension_semantics = [#tpu.dimension_semantics<parallel>, #tpu.dimension_semantics<arbitrary>], iteration_bounds = array<i64: 2, 1>, scalar_prefetch = 0 : i64, scratch_operands = 3 : i64, tpu.core_type = #tpu.core_type<tc>, window_params = [{transform_indices = @transform_0, window_bounds = array<i64: 8, 128>}, {transform_indices = @transform_1, window_bounds = array<i64: 128, 128>}, {transform_indices = @transform_2, window_bounds = array<i64: 1, 128>}, {transform_indices = @transform_3, window_bounds = array<i64: 8, 128>}]} {
    %c0_i32 = arith.constant 0 : i32
    %0 = arith.cmpi eq, %arg1, %c0_i32 : i32
    %1 = arith.extui %0 : i1 to i32
    %c0_i32_0 = arith.constant 0 : i32
    %2 = arith.cmpi ne, %1, %c0_i32_0 : i32
    scf.if %2 {
      %cst_19 = arith.constant 0xFF800000 : f32
      %32 = vector.broadcast %cst_19 : f32 to vector<8x1xf32>
      %c0_20 = arith.constant 0 : index
      %c0_21 = arith.constant 0 : index
      %33 = vector.load %arg7[%c0_20, %c0_21] : memref<8x1xf32, #tpu.memory_space<vmem>>, vector<8x1xf32>
      tpu.vector_store %arg7[%c0_20, %c0_21], %32 {strides = array<i32>} : memref<8x1xf32, #tpu.memory_space<vmem>>, vector<8x1xf32>,
      %cst_22 = arith.constant 0.000000e+00 : f32
      %34 = vector.broadcast %cst_22 : f32 to vector<8x1xf32>
      %c0_23 = arith.constant 0 : index
      %c0_24 = arith.constant 0 : index
      %35 = vector.load %arg8[%c0_23, %c0_24] : memref<8x1xf32, #tpu.memory_space<vmem>>, vector<8x1xf32>
      tpu.vector_store %arg8[%c0_23, %c0_24], %34 {strides = array<i32>} : memref<8x1xf32, #tpu.memory_space<vmem>>, vector<8x1xf32>,
    } else {
    }
    %c0 = arith.constant 0 : index
    %c0_1 = arith.constant 0 : index
    %3 = vector.load %arg2[%c0, %c0_1] : memref<8x128xbf16, #tpu.memory_space<vmem>>, vector<8x128xbf16>
    %c0_2 = arith.constant 0 : index
    %c0_3 = arith.constant 0 : index
    %4 = vector.load %arg3[%c0_2, %c0_3] : memref<128x128xbf16, #tpu.memory_space<vmem>>, vector<128x128xbf16>
    %cst = arith.constant dense<0.000000e+00> : vector<8x128xf32>
    %5 = tpu.matmul %3, %4, %cst {dimension_numbers = #tpu.dot_dimension_numbers<[1], [0], [0], [1], [0, 0, 1, 1], [], []>} : vector<8x128xbf16>, vector<128x128xbf16>, vector<8x128xf32> -> vector<8x128xf32>
    %c0_4 = arith.constant 0 : index
    %c0_5 = arith.constant 0 : index
    %6 = vector.load %arg4[%c0_4, %c0_5] : memref<1x128xf32, #tpu.memory_space<vmem>>, vector<1x128xf32>
    %7 = vector.broadcast %6 : vector<1x128xf32> to vector<8x128xf32>
    %8 = arith.addf %5, %7 : vector<8x128xf32>
    %c128_i32 = arith.constant 128 : i32
    %9 = arith.muli %arg1, %c128_i32 : i32
    %10 = tpu.assume_multiple %9, 128 : i32
    %c0_6 = arith.constant 0 : index
    %11 = arith.index_cast %10 : i32 to index
    %12 = vector.load %arg6[%c0_6, %11] : memref<8x128xf32, #tpu.memory_space<vmem>>, vector<8x128xf32>
    tpu.vector_store %arg6[%c0_6, %11], %8 {strides = array<i32>} : memref<8x128xf32, #tpu.memory_space<vmem>>, vector<8x128xf32>,
    %c0_7 = arith.constant 0 : index
    %c0_8 = arith.constant 0 : index
    %13 = vector.load %arg7[%c0_7, %c0_8] : memref<8x1xf32, #tpu.memory_space<vmem>>, vector<8x1xf32>
    %cst_9 = arith.constant dense<0xFF800000> : vector<8xf32>
    %14 = vector.multi_reduction <maximumf>, %8, %cst_9 [1] : vector<8x128xf32> to vector<8xf32>
    %15 = vector.shape_cast %14 : vector<8xf32> to vector<8x1xf32>
    %16 = arith.maximumf %13, %15 : vector<8x1xf32>
    %c0_10 = arith.constant 0 : index
    %c0_11 = arith.constant 0 : index
    %17 = vector.load %arg8[%c0_10, %c0_11] : memref<8x1xf32, #tpu.memory_space<vmem>>, vector<8x1xf32>
    %18 = arith.subf %13, %16 : vector<8x1xf32>
    %19 = math.exp %18 : vector<8x1xf32>
    %20 = arith.mulf %17, %19 : vector<8x1xf32>
    %21 = vector.broadcast %16 : vector<8x1xf32> to vector<8x128xf32>
    %22 = arith.subf %8, %21 : vector<8x128xf32>
    %23 = math.exp %22 : vector<8x128xf32>
    %cst_12 = arith.constant dense<0.000000e+00> : vector<8xf32>
    %24 = vector.multi_reduction <add>, %23, %cst_12 [1] : vector<8x128xf32> to vector<8xf32>
    %25 = vector.shape_cast %24 : vector<8xf32> to vector<8x1xf32>
    %26 = arith.addf %20, %25 : vector<8x1xf32>
    %c0_13 = arith.constant 0 : index
    %c0_14 = arith.constant 0 : index
    %27 = vector.load %arg8[%c0_13, %c0_14] : memref<8x1xf32, #tpu.memory_space<vmem>>, vector<8x1xf32>
    tpu.vector_store %arg8[%c0_13, %c0_14], %26 {strides = array<i32>} : memref<8x1xf32, #tpu.memory_space<vmem>>, vector<8x1xf32>,
    %c0_15 = arith.constant 0 : index
    %c0_16 = arith.constant 0 : index
    %28 = vector.load %arg7[%c0_15, %c0_16] : memref<8x1xf32, #tpu.memory_space<vmem>>, vector<8x1xf32>
    tpu.vector_store %arg7[%c0_15, %c0_16], %16 {strides = array<i32>} : memref<8x1xf32, #tpu.memory_space<vmem>>, vector<8x1xf32>,
    %c0_i32_17 = arith.constant 0 : i32
    %29 = arith.cmpi eq, %arg1, %c0_i32_17 : i32
    %30 = arith.extui %29 : i1 to i32
    %c0_i32_18 = arith.constant 0 : i32
    %31 = arith.cmpi ne, %30, %c0_i32_18 : i32
    scf.if %31 {
      %c0_19 = arith.constant 0 : index
      %c0_20 = arith.constant 0 : index
      %32 = vector.load %arg7[%c0_19, %c0_20] : memref<8x1xf32, #tpu.memory_space<vmem>>, vector<8x1xf32>
      %c0_21 = arith.constant 0 : index
      %c0_22 = arith.constant 0 : index
      %33 = vector.load %arg8[%c0_21, %c0_22] : memref<8x1xf32, #tpu.memory_space<vmem>>, vector<8x1xf32>
      %34 = math.log %33 : vector<8x1xf32>
      %35 = arith.addf %32, %34 : vector<8x1xf32>
      %c0_23 = arith.constant 0 : index
      %c0_24 = arith.constant 0 : index
      %36 = vector.load %arg6[%c0_23, %c0_24] : memref<8x128xf32, #tpu.memory_space<vmem>>, vector<8x128xf32>
      %37 = vector.broadcast %35 : vector<8x1xf32> to vector<8x128xf32>
      %38 = arith.subf %36, %37 : vector<8x128xf32>
      %39 = arith.truncf %38 : vector<8x128xf32> to vector<8x128xbf16>
      %c0_25 = arith.constant 0 : index
      %c0_26 = arith.constant 0 : index
      %40 = vector.load %arg5[%c0_25, %c0_26] : memref<8x128xbf16, #tpu.memory_space<vmem>>, vector<8x128xbf16>
      tpu.vector_store %arg5[%c0_25, %c0_26], %39 {strides = array<i32>} : memref<8x128xbf16, #tpu.memory_space<vmem>>, vector<8x128xbf16>,
    } else {
    }
    return
  }
  func.func @transform_0(%arg0: i32, %arg1: i32) -> (i32, i32) {
    %c0_i32 = arith.constant 0 : i32
    %c0_i32_0 = arith.constant 0 : i32
    return %arg0, %c0_i32 : i32, i32
  }
  func.func @transform_1(%arg0: i32, %arg1: i32) -> (i32, i32) {
    %c0_i32 = arith.constant 0 : i32
    %c0_i32_0 = arith.constant 0 : i32
    return %c0_i32, %arg1 : i32, i32
  }
  func.func @transform_2(%arg0: i32, %arg1: i32) -> (i32, i32) {
    %c0_i32 = arith.constant 0 : i32
    %c0_i32_0 = arith.constant 0 : i32
    return %c0_i32, %arg1 : i32, i32
  }
  func.func @transform_3(%arg0: i32, %arg1: i32) -> (i32, i32) {
    %c0_i32 = arith.constant 0 : i32
    %c0_i32_0 = arith.constant 0 : i32
    return %arg0, %c0_i32 : i32, i32
  }
}

</mosaic_0001>

<llo_original>
// kernel: tpu_custom_call.1
$region0: #{tpu_custom_call.1}
  #allocation0 [shape = 'u32[]', space=smem, size = 0x4, offset = 0x4, fixed_abs, tag = 'smem constant byte address 0x4 - core index']
  #allocation1 [shape = 'u32[144,128]{1,0:T(1,128)}', space=vmem, size = 0x12000, scoped, tag = 'internal scratch']
  #allocation2 [shape = 'f32[8,128]{1,0:T(8,128)}', space=vmem, size = 0x1000, scoped, tag = 'scratch operand']
  #allocation3 [shape = 'f32[8,1]{1,0:T(8,128)}', space=vmem, size = 0x1000, scoped, tag = 'scratch operand']
  #allocation4 [shape = 'f32[8,1]{1,0:T(8,128)}', space=vmem, size = 0x1000, scoped, tag = 'scratch operand']
  %s0 = inlined_call_operand.hbm [shape: bf16[16,128], index: 0, kind: input, shape index: {}]
  %s1 = inlined_call_operand.hbm [shape: bf16[128,128], index: 1, kind: input, shape index: {}]
  %s2 = inlined_call_operand.vmem [shape: f32[1,128], index: 2, kind: input, shape index: {}]
  %s3 = inlined_call_operand.hbm [shape: bf16[16,128], index: 3, kind: output, shape index: {}]
  %s4 = sld [smem:[#allocation0]]
  $region61: #{tpu_custom_call.1} parent=0
    _
  %s6 = ssub.s32 1, %s4
  %s7 = scalar_select 0, %s6, %s4
  $region1: #{tpu_custom_call.1} parent=0
    #allocation5 [shape = 'u8[4096]{0}', space=vmem, size = 0x1000, scoped, tag = 'input window, operand 0']
    #allocation6 [shape = 's32[2]{0}', space=sflag, size = 0x8, scoped, tag = 'scoped memory for tpu_custom_call.1']
    #allocation7 [shape = 's32[2]{0}', space=sflag, size = 0x8, scoped, tag = 'scoped memory for tpu_custom_call.1']
    #allocation8 [shape = 'u8[32768]{0}', space=vmem, size = 0x8000, scoped, tag = 'input window, operand 1, single buffered']
    #allocation9 [shape = 's32[1]{0}', space=sflag, size = 0x4, scoped, tag = 'scoped memory for tpu_custom_call.1']
    #allocation10 [shape = 'u8[4096]{0}', space=vmem, size = 0x1000, scoped, tag = 'output window, operand 0']
    %8 = vsyncpa [#allocation6], 0
    %s9 = scalar_lea.sflag [#allocation6], 1
    %10 = vsyncpa %s9, 0
    %11 = vsyncpa [#allocation9], 0
    %12 = vsyncpa [#allocation7], 0
    %s13 = scalar_lea.sflag [#allocation7], 1
    %14 = vsyncpa %s13, 0
    loop: start=0, step=1, limit=4
    $region2: #{tpu_custom_call.1} parent=1 // loop_pre_header
      _
    $region3: #{tpu_custom_call.1} parent=1 // loop_header
      %s16 = sphi 0, %s20
      %p17 = scmp.ge.s32.totalorder %s16, 4
      %s23 = sphi 0, %s35
      %s24 = sphi 0, %s31
      %s25 = sphi 0, %s23
      %s26 = sphi 0, %s24
      %s27 = sphi 0, %s25
      %s28 = sphi 0, %s26
      %s38 = sphi 0, %s40
      %s41 = sphi 0, %s38
      %s42 = sphi 0, %s41
      %s58 = sphi 0, %s42
      %s64 = sphi 0, %s66
      %s67 = sphi 0, %s64
      %s68 = sphi 0, %s67
      %s84 = sphi 0, %s68
      %s90 = sphi 0, %s92
      %s93 = sphi 0, %s90
      %s94 = sphi 0, %s93
      %s110 = sphi 0, %s94
      %s116 = sphi 0, %s118
      %s119 = sphi 0, %s116
      %s120 = sphi 0, %s119
      %s136 = sphi 0, %s120
    $region4: #{tpu_custom_call.1} parent=1 // loop_header_branch
      %19 = sbr.rel (%p17) target = $region8
    $region5: #{tpu_custom_call.1} parent=1 // loop_body
      %s21 = ssub.s32 %s16, 1
      %s22 = ssub.s32 %s16, 2
      %s29 = sadd.s32 1, %s24
      %p30 = scmp.ge.s32.totalorder %s29, 1
      %s31 = scalar_select %p30, 0, %s29
      %s32 = sadd.s32 1, %s23
      %s33 = scalar_select %p30, %s32, %s23
      %p34 = scmp.ge.s32.totalorder %s33, 2
      %s35 = scalar_select %p34, 0, %s33
      %s36 = ssub.s32 %s23, %s35
      %p37 = scmp.eq.s32.totalorder %s36, 0
      %s39 = sadd.s32 %s38, 1
      %s40 = scalar_select %p37, %s38, %s39
      %p43 = pneg %p37
      %p44 = scmp.eq.s32.totalorder %s16, 1
      %p45 = por %p43, %p44
      %p46 = scmp.ne.s32.totalorder %s38, %s41
      %p47 = scmp.eq.s32.totalorder %s16, 0
      %p48 = por %p46, %p47
      %p49 = scmp.ne.s32.totalorder %s38, %s41
      %p50 = scmp.eq.s32.totalorder %s21, 1
      %p51 = por %p49, %p50
      %p52 = scmp.ne.s32.totalorder %s41, %s42
      %p53 = scmp.eq.s32.totalorder %s21, 0
      %p54 = por %p52, %p53
      %p55 = scmp.ne.s32.totalorder %s41, %s42
      %p56 = scmp.eq.s32.totalorder %s22, 1
      %p57 = por %p55, %p56
      %p59 = scmp.ne.s32.totalorder %s42, %s58
      %p60 = scmp.eq.s32.totalorder %s22, 0
      %p61 = por %p59, %p60
      %s62 = ssub.s32 %s24, %s31
      %p63 = scmp.eq.s32.totalorder %s62, 0
      %s65 = sadd.s32 %s64, 1
      %s66 = scalar_select %p63, %s64, %s65
      %p69 = pneg %p63
      %p70 = scmp.eq.s32.totalorder %s16, 1
      %p71 = por %p69, %p70
      %p72 = scmp.ne.s32.totalorder %s64, %s67
      %p73 = scmp.eq.s32.totalorder %s16, 0
      %p74 = por %p72, %p73
      %p75 = scmp.ne.s32.totalorder %s64, %s67
      %p76 = scmp.eq.s32.totalorder %s21, 1
      %p77 = por %p75, %p76
      %p78 = scmp.ne.s32.totalorder %s67, %s68
      %p79 = scmp.eq.s32.totalorder %s21, 0
      %p80 = por %p78, %p79
      %p81 = scmp.ne.s32.totalorder %s67, %s68
      %p82 = scmp.eq.s32.totalorder %s22, 1
      %p83 = por %p81, %p82
      %p85 = scmp.ne.s32.totalorder %s68, %s84
      %p86 = scmp.eq.s32.totalorder %s22, 0
      %p87 = por %p85, %p86
      %s88 = ssub.s32 %s24, %s31
      %p89 = scmp.eq.s32.totalorder %s88, 0
      %s91 = sadd.s32 %s90, 1
      %s92 = scalar_select %p89, %s90, %s91
      %p95 = pneg %p89
      %p96 = scmp.eq.s32.totalorder %s16, 1
      %p97 = por %p95, %p96
      %p98 = scmp.ne.s32.totalorder %s90, %s93
      %p99 = scmp.eq.s32.totalorder %s16, 0
      %p100 = por %p98, %p99
      %p101 = scmp.ne.s32.totalorder %s90, %s93
      %p102 = scmp.eq.s32.totalorder %s21, 1
      %p103 = por %p101, %p102
      %p104 = scmp.ne.s32.totalorder %s93, %s94
      %p105 = scmp.eq.s32.totalorder %s21, 0
      %p106 = por %p104, %p105
      %p107 = scmp.ne.s32.totalorder %s93, %s94
      %p108 = scmp.eq.s32.totalorder %s22, 1
      %p109 = por %p107, %p108
      %p111 = scmp.ne.s32.totalorder %s94, %s110
      %p112 = scmp.eq.s32.totalorder %s22, 0
      %p113 = por %p111, %p112
      %s114 = ssub.s32 %s23, %s35
      %p115 = scmp.eq.s32.totalorder %s114, 0
      %s117 = sadd.s32 %s116, 1
      %s118 = scalar_select %p115, %s116, %s117
      %p121 = pneg %p115
      %p122 = scmp.eq.s32.totalorder %s16, 1
      %p123 = por %p121, %p122
      %p124 = scmp.ne.s32.totalorder %s116, %s119
      %p125 = scmp.eq.s32.totalorder %s16, 0
      %p126 = por %p124, %p125
      %p127 = scmp.ne.s32.totalorder %s116, %s119
      %p128 = scmp.eq.s32.totalorder %s21, 1
      %p129 = por %p127, %p128
      %p130 = scmp.ne.s32.totalorder %s119, %s120
      %p131 = scmp.eq.s32.totalorder %s21, 0
      %p132 = por %p130, %p131
      %p133 = scmp.ne.s32.totalorder %s119, %s120
      %p134 = scmp.eq.s32.totalorder %s22, 1
      %p135 = por %p133, %p134
      %p137 = scmp.ne.s32.totalorder %s120, %s136
      %p138 = scmp.eq.s32.totalorder %s22, 0
      %p139 = por %p137, %p138
      %p140 = scmp.le.s32.totalorder 1, %s16
      %p141 = scmp.lt.s32.totalorder %s16, 3
      %p142 = pnand %p140, %p141
      %p143 = pneg %p142
      // Predicated region
      $region9: #{tpu_custom_call.1} parent=5 // pred_check
        _
      $region10: #{tpu_custom_call.1} parent=5 // pred_check_branch
        %145 = sbr.rel (%p142) target = $region12
      $region11: #{tpu_custom_call.1} parent=5 // pred_region
        %s146 = ssub.s32 %s16, 1
        // Predicated region
        $region13: #{tpu_custom_call.1} parent=11 // pred_check
          %p147 = pneg %p80
        $region14: #{tpu_custom_call.1} parent=11 // pred_check_branch
          %149 = sbr.rel (%p147) target = $region16
        $region15: #{tpu_custom_call.1} parent=11 // pred_region
          %s151 = ssub.s32 1024, 1024
          %152 = vsyncadd [#allocation9], %s151
          %s153 = smul.addr %s26, 64
          %s154 = scalar_lea.hbm %s1, %s153
          %s155 = sshll.u32 [#allocation8], 4
          %s156 = int_to_ptr.vmem [resolvable:$true] %s155
          %161 = dma.hbm_to_vmem [thread:$0]  %s154, 1024, %s156, [#allocation9], 64, 64, 4
        $region16: #{tpu_custom_call.1} parent=11 // pred_fallthru
          _
        // Predicated region
        $region17: #{tpu_custom_call.1} parent=11 // pred_check
          %p162 = pneg %p106
        $region18: #{tpu_custom_call.1} parent=11 // pred_check_branch
          %164 = sbr.rel (%p162) target = $region20
        $region19: #{tpu_custom_call.1} parent=11 // pred_region
          %p165 = scmp.lt.s32.totalorder %s26, 0
          %s166 = scalar_select %p165, %s26, 0
          %s167 = scalar_lea.vmem %s2, %s166
        $region20: #{tpu_custom_call.1} parent=11 // pred_fallthru
          _
      $region12: #{tpu_custom_call.1} parent=5 // pred_fallthru
        _
      %p168 = scmp.lt.s32.totalorder %s16, 2
      // Predicated region
      $region21: #{tpu_custom_call.1} parent=5 // pred_check
        %p169 = pneg %p168
      $region22: #{tpu_custom_call.1} parent=5 // pred_check_branch
        %171 = sbr.rel (%p169) target = $region24
      $region23: #{tpu_custom_call.1} parent=5 // pred_region
        // Predicated region
        $region25: #{tpu_custom_call.1} parent=23 // pred_check
          %p172 = pneg %p48
        $region26: #{tpu_custom_call.1} parent=23 // pred_check_branch
          %174 = sbr.rel (%p172) target = $region28
        $region27: #{tpu_custom_call.1} parent=23 // pred_region
          %s175 = sand.u32 %s38, 1
          %s176 = scalar_lea.sflag [#allocation6], %s175
          %s177 = sand.u32 %s38, 1
          %s178 = smul.addr %s177, 4
          %s179 = scalar_lea.vmem [#allocation5], %s178
          %s181 = ssub.s32 64, 64
          %182 = vsyncadd %s176, %s181
          %s183 = smul.addr %s23, 64
          %s184 = scalar_lea.hbm %s0, %s183
          %s186 = sshll.u32 %s179, 4
          %s187 = int_to_ptr.vmem [resolvable:$true] %s186
          %189 = dma.hbm_to_vmem [thread:$0]  %s184, 64, %s187, %s176
        $region28: #{tpu_custom_call.1} parent=23 // pred_fallthru
          _
      $region24: #{tpu_custom_call.1} parent=5 // pred_fallthru
        _
      %p190 = scmp.le.s32.totalorder 1, %s16
      %p191 = scmp.lt.s32.totalorder %s16, 3
      %p192 = pnand %p190, %p191
      %p193 = pneg %p192
      // Predicated region
      $region29: #{tpu_custom_call.1} parent=5 // pred_check
        _
      $region30: #{tpu_custom_call.1} parent=5 // pred_check_branch
        %195 = sbr.rel (%p192) target = $region32
      $region31: #{tpu_custom_call.1} parent=5 // pred_region
        %s196 = ssub.s32 %s16, 1
        %s197 = sand.u32 %s41, 1
        %s198 = scalar_lea.sflag [#allocation6], %s197
        %s199 = sand.u32 %s41, 1
        %s200 = smul.addr %s199, 4
        %s201 = scalar_lea.vmem [#allocation5], %s200
        // Predicated region
        $region33: #{tpu_custom_call.1} parent=31 // pred_check
          %p202 = pneg %p54
        $region34: #{tpu_custom_call.1} parent=31 // pred_check_branch
          %204 = sbr.rel (%p202) target = $region36
        $region35: #{tpu_custom_call.1} parent=31 // pred_region
          %205 = dma.done %s198, 64
        $region36: #{tpu_custom_call.1} parent=31 // pred_fallthru
          _
        // Predicated region
        $region37: #{tpu_custom_call.1} parent=31 // pred_check
          %p206 = pneg %p80
        $region38: #{tpu_custom_call.1} parent=31 // pred_check_branch
          %208 = sbr.rel (%p206) target = $region40
        $region39: #{tpu_custom_call.1} parent=31 // pred_region
          %209 = dma.done [#allocation9], 1024
        $region40: #{tpu_custom_call.1} parent=31 // pred_fallthru
          _
        %s210 = sand.u32 %s41, 1
        %s211 = scalar_lea.sflag [#allocation6], %s210
        %s212 = sand.u32 %s41, 1
        %s213 = smul.addr %s212, 4
        %s214 = scalar_lea.vmem [#allocation5], %s213
        %p215 = pneg %p54
        %p216 = pneg %p51
        %p217 = pneg %p80
        %p218 = pneg %p77
        %p219 = scmp.lt.s32.totalorder %s26, 0
        %s220 = scalar_select %p219, %s26, 0
        %s221 = scalar_lea.vmem %s2, %s220
        %p222 = pneg %p106
        %p223 = pneg %p103
        %p224 = pneg %p132
        %p225 = pneg %p129
        %s226 = sand.u32 %s119, 1
        %s227 = scalar_lea.sflag [#allocation7], %s226
        %s228 = sand.u32 %s119, 1
        %s229 = smul.addr %s228, 4
        %s230 = scalar_lea.vmem [#allocation10], %s229
        %p231 = scmp.lt.s32.totalorder %s26, 0
        %s232 = scalar_select %p231, %s26, 0
        %s233 = scalar_lea.vmem %s2, %s232
        %p235 = scmp.eq.s32.totalorder %s26, 0
        // Predicated region
        $region41: #{tpu_custom_call.1} parent=31 // pred_check
          %p236 = pneg %p235
        $region42: #{tpu_custom_call.1} parent=31 // pred_check_branch
          %238 = sbr.rel (%p236) target = $region44
        $region43: #{tpu_custom_call.1} parent=31 // pred_region
          %vm239 = vcmask 7168
          %240 = vst.msk [vmem:[#allocation3] sm:$0xff] %vm239, -inf
          %241 = vst.msk [vmem:[#allocation4] sm:$0xff] %vm239, 0.0
        $region44: #{tpu_custom_call.1} parent=31 // pred_fallthru
          _
        %v242 = vld [vmem:[%s201] sm:$0xf]
        %v243 = vld [vmem:[#allocation8] sm:$0xf]
        %v244 = vld [vmem:[#allocation8 + $0x4] sm:$0xf]
        %v245 = vld [vmem:[#allocation8 + $0x8] sm:$0xf]
        %v246 = vld [vmem:[#allocation8 + $0xc] sm:$0xf]
        %v247 = vld [vmem:[#allocation8 + $0x10] sm:$0xf]
        %v248 = vld [vmem:[#allocation8 + $0x14] sm:$0xf]
        %v249 = vld [vmem:[#allocation8 + $0x18] sm:$0xf]
        %v250 = vld [vmem:[#allocation8 + $0x1c] sm:$0xf]
        %v251 = vld [vmem:[#allocation8 + $0x20] sm:$0xf]
        %v252 = vld [vmem:[#allocation8 + $0x24] sm:$0xf]
        %v253 = vld [vmem:[#allocation8 + $0x28] sm:$0xf]
        %v254 = vld [vmem:[#allocation8 + $0x2c] sm:$0xf]
        %v255 = vld [vmem:[#allocation8 + $0x30] sm:$0xf]
        %v256 = vld [vmem:[#allocation8 + $0x34] sm:$0xf]
        %v257 = vld [vmem:[#allocation8 + $0x38] sm:$0xf]
        %v258 = vld [vmem:[#allocation8 + $0x3c] sm:$0xf]
        %v259 = vld [vmem:[%s233] sm:$0x1]
        %v261 = vlaneseq
        %v262 = vshrl.u32 %v261, 7
        %v263 = vsub.s32 0, %v262
        %v264 = vrot.slane %v259, %v263
        %v282 = vunpack.c.l.b16 %v243
        %v283 = vunpack.c.l.b16 %v244
        %v284 = vunpack.c.l.b16 %v245
        %v285 = vunpack.c.l.b16 %v246
        %v286 = vunpack.c.l.b16 %v247
        %v287 = vunpack.c.l.b16 %v248
        %v288 = vunpack.c.l.b16 %v249
        %v289 = vunpack.c.l.b16 %v250
        %v290 = vunpack.c.l.b16 %v251
        %v291 = vunpack.c.l.b16 %v252
        %v292 = vunpack.c.l.b16 %v253
        %v293 = vunpack.c.l.b16 %v254
        %v294 = vunpack.c.l.b16 %v255
        %v295 = vunpack.c.l.b16 %v256
        %v296 = vunpack.c.l.b16 %v257
        %v297 = vunpack.c.l.b16 %v258
        %v298 = vpack.c.b16 %v283, %v282
        %v299 = vpack.c.b16 %v285, %v284
        %v300 = vpack.c.b16 %v287, %v286
        %v301 = vpack.c.b16 %v289, %v288
        %v302 = vpack.c.b16 %v291, %v290
        %v303 = vpack.c.b16 %v293, %v292
        %v304 = vpack.c.b16 %v295, %v294
        %v305 = vpack.c.b16 %v297, %v296
        %314 = vmatprep.subr.bf16.mxu0 0
        %315 = vmatpush1.bf16.msra.mxu0 %v305
        %316 = vmatprep.subr.bf16.mxu0 0
        %317 = vmatpush1.bf16.msra.mxu0 %v304
        %318 = vmatprep.subr.bf16.mxu0 0
        %319 = vmatpush1.bf16.msra.mxu0 %v303
        %320 = vmatprep.subr.bf16.mxu0 0
        %321 = vmatpush1.bf16.msra.mxu0 %v302
        %322 = vmatprep.subr.bf16.mxu0 0
        %323 = vmatpush1.bf16.msra.mxu0 %v301
        %324 = vmatprep.subr.bf16.mxu0 0
        %325 = vmatpush1.bf16.msra.mxu0 %v300
        %326 = vmatprep.subr.bf16.mxu0 0
        %327 = vmatpush1.bf16.msra.mxu0 %v299
        %328 = vmatprep.subr.bf16.mxu0 0
        %329 = vmatpush1.bf16.msra.mxu0 %v298
        %330 = vmatprep.subr.bf16.mxu0 0
        %331 = vmatpush2.bf16.msra.mxu0 0
        %332 = vmatprep.subr.bf16.mxu0 0
        %333 = vmatpush2.bf16.msra.mxu0 0
        %334 = vmatprep.subr.bf16.mxu0 0
        %335 = vmatpush2.bf16.msra.mxu0 0
        %336 = vmatprep.subr.bf16.mxu0 0
        %337 = vmatpush2.bf16.msra.mxu0 0
        %338 = vmatprep.subr.bf16.mxu0 0
        %339 = vmatpush2.bf16.msra.mxu0 0
        %340 = vmatprep.subr.bf16.mxu0 0
        %341 = vmatpush2.bf16.msra.mxu0 0
        %342 = vmatprep.subr.bf16.mxu0 0
        %343 = vmatpush2.bf16.msra.mxu0 0
        %344 = vmatprep.subr.bf16.mxu0 0
        %345 = vmatpush2.bf16.msra.mxu0 0
        %346 = vmatprep.mubr.bf16.mxu0 0
        %347 = vmatmul.mubr.bf16.gmra.mxu0 %v242
        %v348 = vpop.f32.mrf.mxu0
        %v349 = vadd.f32 %v264, %v348
        %v350 = vpop.f32.mrf.mxu0
        %v351 = vpop.f32.mrf.mxu0
        %v352 = vpop.f32.mrf.mxu0
        %353 = vdwg.mxu0
        %s354 = smul.u32 %s26, 128
        %s355 = sshra.s32 %s354, 7
        %s356 = sand.u32 %s354, 127
        %s357 = scalar_lea.vmem [#allocation2], %s355
        %358 = vst [vmem:[%s357] sm:$0xff] %v349
        %v359 = vld [vmem:[#allocation3] sm:$0xff]
        %360 = vmax.xlane.f32.xlu0 %v349
        %v361 = vpop.xlane.xlu0 %360
        %v362 = vmax.f32 %v359, %v361
        %v363 = vld [vmem:[#allocation4] sm:$0xff]
        %v364 = vsub.f32 %v359, %v362
        %v365 = vmul.f32 %v364, 1.442695
        %v366 = vpow.pop %v365
        %v367 = vmul.f32 %v363, %v366
        %369 = vset.pattern.permute.xlu0 0
        %370 = vperm.xlu0 %369, %v362
        %v371 = vpop.permute.xlu0 %370
        %v373 = vsub.f32 %v349, %v371
        %v374 = vmul.f32 %v373, 1.442695
        %v375 = vpow.pop %v374
        %376 = vadd.xlane.f32.xlu0 %v375
        %v377 = vpop.xlane.xlu0 %376
        %v378 = vadd.f32 %v367, %v377
        %vm379 = vcmask 7168
        %380 = vst.msk [vmem:[#allocation4] sm:$0xff] %vm379, %v378
        %381 = vst.msk [vmem:[#allocation3] sm:$0xff] %vm379, %v362
        // Predicated region
        $region45: #{tpu_custom_call.1} parent=31 // pred_check
          %p382 = pneg %p235
        $region46: #{tpu_custom_call.1} parent=31 // pred_check_branch
          %384 = sbr.rel (%p382) target = $region48
        $region47: #{tpu_custom_call.1} parent=31 // pred_region
          %v385 = vld [vmem:[#allocation3] sm:$0xff]
          %v386 = vld [vmem:[#allocation4] sm:$0xff]
          %v387 = vlog2.pop %v386
          %v388 = vmul.f32 %v387, 0.6931472
          %v389 = vadd.f32 %v385, %v388
          %v390 = vld [vmem:[#allocation2] sm:$0xff]
          %392 = vset.pattern.permute.xlu0 0
          %393 = vperm.xlu0 %392, %v389
          %v394 = vpop.permute.xlu0 %393
          %v396 = vsub.f32 %v390, %v394
          %v397 = vpack.c.bf16 %v396, %v396
          %398 = vst [vmem:[%s230] sm:$0xf] %v397
        $region48: #{tpu_custom_call.1} parent=31 // pred_fallthru
          _
        %s399 = sand.u32 %s119, 1
        %s400 = scalar_lea.sflag [#allocation7], %s399
        %s401 = sand.u32 %s119, 1
        %s402 = smul.addr %s401, 4
        %s403 = scalar_lea.vmem [#allocation10], %s402
        // Predicated region
        $region49: #{tpu_custom_call.1} parent=31 // pred_check
          %p404 = pneg %p129
        $region50: #{tpu_custom_call.1} parent=31 // pred_check_branch
          %406 = sbr.rel (%p404) target = $region52
        $region51: #{tpu_custom_call.1} parent=31 // pred_region
          %s408 = ssub.s32 64, 64
          %409 = vsyncadd %s400, %s408
          %s410 = smul.addr %s25, 64
          %s411 = scalar_lea.hbm %s3, %s410
          %s413 = sshll.u32 %s403, 4
          %s414 = int_to_ptr.vmem [resolvable:$true] %s413
          %416 = dma.vmem_to_hbm [thread:$0]  %s414, 64, %s411, %s400
        $region52: #{tpu_custom_call.1} parent=31 // pred_fallthru
          _
      $region32: #{tpu_custom_call.1} parent=5 // pred_fallthru
        _
      %p417 = scmp.le.s32.totalorder 2, %s16
      // Predicated region
      $region53: #{tpu_custom_call.1} parent=5 // pred_check
        %p418 = pneg %p417
      $region54: #{tpu_custom_call.1} parent=5 // pred_check_branch
        %420 = sbr.rel (%p418) target = $region56
      $region55: #{tpu_custom_call.1} parent=5 // pred_region
        %s421 = ssub.s32 %s16, 2
        // Predicated region
        $region57: #{tpu_custom_call.1} parent=55 // pred_check
          %p422 = pneg %p135
        $region58: #{tpu_custom_call.1} parent=55 // pred_check_branch
          %424 = sbr.rel (%p422) target = $region60
        $region59: #{tpu_custom_call.1} parent=55 // pred_region
          %s425 = sand.u32 %s120, 1
          %s426 = scalar_lea.sflag [#allocation7], %s425
          %s427 = sand.u32 %s120, 1
          %s428 = smul.addr %s427, 4
          %s429 = scalar_lea.vmem [#allocation10], %s428
          %430 = dma.done %s426, 64
        $region60: #{tpu_custom_call.1} parent=55 // pred_fallthru
          _
      $region56: #{tpu_custom_call.1} parent=5 // pred_fallthru
        _
    $region6: #{tpu_custom_call.1} parent=1 // loop_footer
      %s20 = sadd.s32 1, %s16
    $region7: #{tpu_custom_call.1} parent=1 // loop_footer_branch
      %15 = sbr.rel target = $region3
    $region8: #{tpu_custom_call.1} parent=1 // loop_exit
      _
    %431 = vsyncpa [#allocation6], 1
    %s432 = scalar_lea.sflag [#allocation6], 1
    %433 = vsyncpa %s432, 1
    %434 = vsyncpa [#allocation9], 1
    %435 = vsyncpa [#allocation7], 1
    %s436 = scalar_lea.sflag [#allocation7], 1
    %437 = vsyncpa %s436, 1

</llo_original>
